<compile_context>
chip_gen: v5e
topology: v5e:2x2
jax: 0.10.0
libtpu: 0.0.40
codegen_flags: <defaults>
</compile_context>

<pallas_src>
import jax
import jax.numpy as jnp
from jax.experimental import pallas as pl
from jax.experimental.pallas import tpu as pltpu

HIDDEN_DIM = 10
OBS_DIM = 2
MSG_DIM = 4
ENC_DIM = 5                                   # width of obs_Mod / msg_Enc outputs
ACT_DIM = 2

PAD_W = OBS_DIM + HIDDEN_DIM + MSG_DIM + 1    # 17: [obs | state | msg | 1]
HEAD_W = ACT_DIM + MSG_DIM                    # 6 : [action | message] logits
OUT_W = HEAD_W + HIDDEN_DIM                   # 16: [action | message | new_state]


# --------------------------------------------------------------------------
# Kernel: one grid step == one ariaActor.forward() step of the rollout.
# --------------------------------------------------------------------------
def aria_actor_rollout_kernel(bc_ref, obs_ref, msg_ref, state0_ref, p_ref,
                              out_ref, state_sc):
    t = pl.program_id(0)
    b = obs_ref.shape[0]

    # Step 0: load the initial recurrent state last_state[batch_counter]
    # (selected by the scalar-prefetched batch_counter via the index_map).
    @pl.when(t == 0)
    def _():
        state_sc[...] = state0_ref[...]

    # Assemble x = [obs | state | msg | 1]  -> [B, 17]  (in-register, no HBM x)
    ones = jnp.ones((b, 1), jnp.float32)
    x = jnp.concatenate([obs_ref[...], state_sc[...], msg_ref[...], ones],
                        axis=-1)

    # Layer 1: block-diag(obs_Mod | msg_Enc); col 16 carries the constant 1.
    h1 = jnp.maximum(
        jnp.dot(x, p_ref[0], preferred_element_type=jnp.float32), 0.0)
    # Layer 2: rep_Mod on cat([o, m]) (h1 cols 0:10).
    h2 = jnp.maximum(
        jnp.dot(h1, p_ref[1], preferred_element_type=jnp.float32), 0.0)
    # Heads: one dot for [action_Mod | msg_Dec | I] -> z cols 0:2 action
    # logits, 2:6 message logits, 6:16 new_state (identity-carried).
    z = jnp.dot(h2, p_ref[2], preferred_element_type=jnp.float32)
    z16 = z[:, 0:OUT_W]                                          # [B, 16]

    # Shared segmented softmax over cols 0:6 (one exp, masked max/sum,
    # approx reciprocal on the EUP); cols 6:16 pass through unchanged.
    col = jax.lax.broadcasted_iota(jnp.int32, (b, OUT_W), 1)
    is_act = col < ACT_DIM
    is_msg = jnp.logical_and(col >= ACT_DIM, col < HEAD_W)
    is_head = col < HEAD_W

    neg = jnp.float32(-1e30)
    act_max = jnp.max(jnp.where(is_act, z16, neg), axis=-1, keepdims=True)
    msg_max = jnp.max(jnp.where(is_msg, z16, neg), axis=-1, keepdims=True)
    seg_max = jnp.where(is_act, act_max, msg_max)
    e = jnp.exp(jnp.where(is_head, z16 - seg_max, 0.0))
    act_sum = jnp.sum(jnp.where(is_act, e, 0.0), axis=-1, keepdims=True)
    msg_sum = jnp.sum(jnp.where(is_msg, e, 0.0), axis=-1, keepdims=True)
    seg_sum = jnp.where(is_act, act_sum, msg_sum)
    probs = e * pl.reciprocal(seg_sum, approx=True)

    # Single full-block store: [action(2) | message(4) | new_state(10)].
    out_ref[...] = jnp.where(is_head, probs, z16)

    # Recurrence: new_state feeds the next step.
    state_sc[...] = h2[:, 0:HIDDEN_DIM]


# --------------------------------------------------------------------------
# Parameter init / packing (done ONCE per rollout, not per step)
# --------------------------------------------------------------------------
def init_params(key, hidden_dim=HIDDEN_DIM):
    """PyTorch-Linear-style init U(-1/sqrt(fan_in), 1/sqrt(fan_in)).
    Weights stored [in, out] (transposed vs torch); biases [1, out]."""
    def linear(k, fan_in, fan_out):
        kw, kb = jax.random.split(k)
        bound = 1.0 / jnp.sqrt(jnp.float32(fan_in))
        w = jax.random.uniform(kw, (fan_in, fan_out), jnp.float32, -bound, bound)
        b = jax.random.uniform(kb, (1, fan_out), jnp.float32, -bound, bound)
        return w, b

    k_obs, k_enc, k_rep, k_act, k_dec = jax.random.split(key, 5)
    w_obs, b_obs = linear(k_obs, OBS_DIM + hidden_dim, ENC_DIM)   # obs_Mod
    w_enc, b_enc = linear(k_enc, MSG_DIM, ENC_DIM)                # msg_Enc
    w_rep, b_rep = linear(k_rep, hidden_dim, hidden_dim)          # rep_Mod
    w_act, b_act = linear(k_act, hidden_dim, ACT_DIM)             # action_Mod
    w_dec, b_dec = linear(k_dec, hidden_dim, MSG_DIM)             # msg_Dec
    return dict(w_obs=w_obs, b_obs=b_obs, w_enc=w_enc, b_enc=b_enc,
                w_rep=w_rep, b_rep=b_rep, w_act=w_act, b_act=b_act,
                w_dec=w_dec, b_dec=b_dec)


def pack_params(params):
    """Pack the five Linears (+ biases) into one [3, 17, 17] f32 slab.

    P[0]: block-diag(obs_Mod, msg_Enc) + bias row 16 + ones carry [16,16]=1
    P[1]: rep_Mod                      + bias row 16 + ones carry [16,16]=1
    P[2]: [action_Mod | msg_Dec | I10] + bias row 16 (cols 6:16 of row 16
          stay ZERO so new_state passes through unchanged)."""
    f32 = jnp.float32

    w1 = jnp.zeros((PAD_W, PAD_W), f32)
    w1 = w1.at[0:OBS_DIM + HIDDEN_DIM, 0:ENC_DIM].set(params["w_obs"])
    w1 = w1.at[OBS_DIM + HIDDEN_DIM:OBS_DIM + HIDDEN_DIM + MSG_DIM,
               ENC_DIM:2 * ENC_DIM].set(params["w_enc"])
    w1 = w1.at[PAD_W - 1, 0:ENC_DIM].set(params["b_obs"][0])
    w1 = w1.at[PAD_W - 1, ENC_DIM:2 * ENC_DIM].set(params["b_enc"][0])
    w1 = w1.at[PAD_W - 1, PAD_W - 1].set(1.0)

    w2 = jnp.zeros((PAD_W, PAD_W), f32)
    w2 = w2.at[0:HIDDEN_DIM, 0:HIDDEN_DIM].set(params["w_rep"])
    w2 = w2.at[PAD_W - 1, 0:HIDDEN_DIM].set(params["b_rep"][0])
    w2 = w2.at[PAD_W - 1, PAD_W - 1].set(1.0)

    w3 = jnp.zeros((PAD_W, PAD_W), f32)
    w3 = w3.at[0:HIDDEN_DIM, 0:ACT_DIM].set(params["w_act"])
    w3 = w3.at[0:HIDDEN_DIM, ACT_DIM:HEAD_W].set(params["w_dec"])
    w3 = w3.at[0:HIDDEN_DIM, HEAD_W:OUT_W].set(jnp.eye(HIDDEN_DIM, dtype=f32))
    w3 = w3.at[PAD_W - 1, 0:ACT_DIM].set(params["b_act"][0])
    w3 = w3.at[PAD_W - 1, ACT_DIM:HEAD_W].set(params["b_dec"][0])

    return jnp.stack([w1, w2, w3], axis=0)             # [3, 17, 17]


# --------------------------------------------------------------------------
# Wrappers
# --------------------------------------------------------------------------
@jax.jit
def aria_actor_rollout(obs_seq, msg_seq, last_state, packed_params,
                       batch_counter):
    """Run T ariaActor.forward steps in ONE pallas_call.

    obs_seq [T,B,2], msg_seq [T,B,4], last_state [S,B,10], packed [3,17,17].
    Step 0 uses last_state[batch_counter]; step t>0 uses the state produced
    at step t-1 (resident in VMEM).  Returns packed [T,B,16] =
    [action(2) | message(4) | new_state(10)] per step."""
    T, B, _ = obs_seq.shape
    bc = jnp.asarray(batch_counter, jnp.int32).reshape((1,))

    grid_spec = pltpu.PrefetchScalarGridSpec(
        num_scalar_prefetch=1,
        grid=(T,),
        in_specs=[
            pl.BlockSpec((None, B, OBS_DIM), lambda t, bc: (t, 0, 0)),
            pl.BlockSpec((None, B, MSG_DIM), lambda t, bc: (t, 0, 0)),
            pl.BlockSpec((None, B, HIDDEN_DIM), lambda t, bc: (bc[0], 0, 0)),
            pl.BlockSpec((3, PAD_W, PAD_W), lambda t, bc: (0, 0, 0)),
        ],
        out_specs=pl.BlockSpec((None, B, OUT_W), lambda t, bc: (t, 0, 0)),
        scratch_shapes=[pltpu.VMEM((B, HIDDEN_DIM), jnp.float32)],
    )

    return pl.pallas_call(
        aria_actor_rollout_kernel,
        out_shape=jax.ShapeDtypeStruct((T, B, OUT_W), jnp.float32),
        grid_spec=grid_spec,
        compiler_params=pltpu.CompilerParams(
            dimension_semantics=("arbitrary",)),   # recurrent -> sequential
    )(bc, obs_seq.astype(jnp.float32), msg_seq.astype(jnp.float32),
      last_state.astype(jnp.float32), packed_params)


def split_packed(out):
    """[..., 16] packed -> (action, message, new_state)."""
    return (out[..., 0:ACT_DIM],
            out[..., ACT_DIM:HEAD_W],
            out[..., HEAD_W:OUT_W])


def aria_actor_forward(obs, msg, last_state, packed_params, batch_counter):
    """Single-step forward with the exact module semantics (T=1 rollout)."""
    out = aria_actor_rollout(obs[None], msg[None], last_state, packed_params,
                             batch_counter)[0]
    return split_packed(out)


# --------------------------------------------------------------------------
# Pure-JAX reference (mirrors the PyTorch module, highest precision)
# --------------------------------------------------------------------------
def reference_step(obs, msg, state, params):
    hp = jax.lax.Precision.HIGHEST
    inO = jnp.concatenate([obs, state], axis=-1)
    o = jax.nn.relu(jnp.dot(inO, params["w_obs"], precision=hp) + params["b_obs"])
    m = jax.nn.relu(jnp.dot(msg, params["w_enc"], precision=hp) + params["b_enc"])
    new_state = jax.nn.relu(
        jnp.dot(jnp.concatenate([o, m], axis=-1), params["w_rep"], precision=hp)
        + params["b_rep"])
    action = jax.nn.softmax(
        jnp.dot(new_state, params["w_act"], precision=hp) + params["b_act"], -1)
    message = jax.nn.softmax(
        jnp.dot(new_state, params["w_dec"], precision=hp) + params["b_dec"], -1)
    return action, message, new_state


def reference_rollout(obs_seq, msg_seq, init_state, params):
    def step(state, inp):
        obs, msg = inp
        a, m, s = reference_step(obs, msg, state, params)
        return s, (a, m, s)
    _, (A, M, S) = jax.lax.scan(step, init_state, (obs_seq, msg_seq))
    return A, M, S


# --------------------------------------------------------------------------
if __name__ == "__main__":
    key = jax.random.PRNGKey(0)
    k_p, k_obs, k_msg, k_state = jax.random.split(key, 4)

    B = 8        # multiple of 8 -> one f32 sublane group, no masked partials
    T = 6        # rollout steps executed inside ONE kernel call
    S = 4        # stored last_state slots; batch_counter indexes this axis

    params = init_params(k_p)
    packed = pack_params(params)                 # packed once per rollout

    obs_seq = jax.random.normal(k_obs, (T, B, OBS_DIM), jnp.float32)
    msg_seq = jax.random.normal(k_msg, (T, B, MSG_DIM), jnp.float32)
    last_state = jax.random.normal(k_state, (S, B, HIDDEN_DIM), jnp.float32)

    # ---- fused rollout (T forward steps, 1 pallas_call) ----
    out = aria_actor_rollout(obs_seq, msg_seq, last_state, packed, 1)
    jax.block_until_ready(out)
    actions, messages, states = split_packed(out)

    A_ref, M_ref, S_ref = reference_rollout(obs_seq, msg_seq, last_state[1],
                                            params)
    assert jnp.allclose(actions, A_ref, atol=2e-2), "rollout action mismatch"
    assert jnp.allclose(messages, M_ref, atol=2e-2), "rollout message mismatch"
    assert jnp.allclose(states, S_ref, atol=5e-2), "rollout state mismatch"
    assert jnp.allclose(jnp.sum(actions, -1), 1.0, atol=1e-2)
    assert jnp.allclose(jnp.sum(messages, -1), 1.0, atol=1e-2)

    # ---- single-step module forward (T=1), traced batch_counter ----
    a1, m1, s1 = aria_actor_forward(obs_seq[0], msg_seq[0], last_state,
                                    packed, 0)
    jax.block_until_ready((a1, m1, s1))
    a2, m2, s2 = aria_actor_forward(obs_seq[0], msg_seq[0], last_state,
                                    packed, 2)   # new counter, no retrace
    jax.block_until_ready((a2, m2, s2))

    a_ref, m_ref, s_ref = reference_step(obs_seq[0], msg_seq[0],
                                         last_state[0], params)
    assert jnp.allclose(a1, a_ref, atol=2e-2), "step action mismatch"
    assert jnp.allclose(m1, m_ref, atol=2e-2), "step message mismatch"
    assert jnp.allclose(s1, s_ref, atol=5e-2), "step state mismatch"

    print("KERNEL_OK")
</pallas_src>

<mosaic_0001>
module attributes {stable_mosaic.version = 11 : i64} {
  func.func @aria_actor_rollout_kernel(%arg0: i32, %arg1: memref<1xi32, #tpu.memory_space<smem>>, %arg2: memref<1x8x2xf32, #tpu.memory_space<vmem>>, %arg3: memref<1x8x4xf32, #tpu.memory_space<vmem>>, %arg4: memref<1x8x10xf32, #tpu.memory_space<vmem>>, %arg5: memref<3x17x17xf32, #tpu.memory_space<vmem>>, %arg6: memref<1x8x16xf32, #tpu.memory_space<vmem>>, %arg7: memref<8x10xf32, #tpu.memory_space<vmem>>) attributes {dimension_semantics = [#tpu.dimension_semantics<arbitrary>], iteration_bounds = array<i64: 6>, scalar_prefetch = 1 : i64, scratch_operands = 1 : i64, tpu.core_type = #tpu.core_type<tc>, window_params = [{transform_indices = @transform_0, window_bounds = array<i64: 1, 8, 2>}, {transform_indices = @transform_1, window_bounds = array<i64: 1, 8, 4>}, {transform_indices = @transform_2, window_bounds = array<i64: 1, 8, 10>}, {pipeline_mode = #tpu.pipeline_mode<synchronous>, transform_indices = @transform_3, window_bounds = array<i64: 3, 17, 17>}, {transform_indices = @transform_4, window_bounds = array<i64: 1, 8, 16>}]} {
    %c0_i32 = arith.constant 0 : i32
    %0 = arith.cmpi eq, %arg0, %c0_i32 : i32
    %1 = arith.extui %0 : i1 to i32
    %c0_i32_0 = arith.constant 0 : i32
    %2 = arith.cmpi ne, %1, %c0_i32_0 : i32
    scf.if %2 {
      %c0_36 = arith.constant 0 : index
      %c0_37 = arith.constant 0 : index
      %c0_38 = arith.constant 0 : index
      %72 = vector.load %arg4[%c0_36, %c0_37, %c0_38] : memref<1x8x10xf32, #tpu.memory_space<vmem>>, vector<1x8x10xf32>
      %73 = vector.shape_cast %72 : vector<1x8x10xf32> to vector<8x10xf32>
      %c0_39 = arith.constant 0 : index
      %c0_40 = arith.constant 0 : index
      %74 = vector.load %arg7[%c0_39, %c0_40] : memref<8x10xf32, #tpu.memory_space<vmem>>, vector<8x10xf32>
      tpu.vector_store %arg7[%c0_39, %c0_40], %73 {strides = array<i32>} : memref<8x10xf32, #tpu.memory_space<vmem>>, vector<8x10xf32>,
    } else {
    }
    %cst = arith.constant 1.000000e+00 : f32
    %3 = vector.broadcast %cst : f32 to vector<8x1xf32>
    %c0 = arith.constant 0 : index
    %c0_1 = arith.constant 0 : index
    %c0_2 = arith.constant 0 : index
    %4 = vector.load %arg2[%c0, %c0_1, %c0_2] : memref<1x8x2xf32, #tpu.memory_space<vmem>>, vector<1x8x2xf32>
    %5 = vector.shape_cast %4 : vector<1x8x2xf32> to vector<8x2xf32>
    %c0_3 = arith.constant 0 : index
    %c0_4 = arith.constant 0 : index
    %6 = vector.load %arg7[%c0_3, %c0_4] : memref<8x10xf32, #tpu.memory_space<vmem>>, vector<8x10xf32>
    %c0_5 = arith.constant 0 : index
    %c0_6 = arith.constant 0 : index
    %c0_7 = arith.constant 0 : index
    %7 = vector.load %arg3[%c0_5, %c0_6, %c0_7] : memref<1x8x4xf32, #tpu.memory_space<vmem>>, vector<1x8x4xf32>
    %8 = vector.shape_cast %7 : vector<1x8x4xf32> to vector<8x4xf32>
    %9 = tpu.concatenate %5, %6, %8, %3 in 1 : vector<8x2xf32>, vector<8x10xf32>, vector<8x4xf32>, vector<8x1xf32> -> vector<8x17xf32>
    %c0_8 = arith.constant 0 : index
    %c0_9 = arith.constant 0 : index
    %c0_10 = arith.constant 0 : index
    %10 = vector.load %arg5[%c0_8, %c0_9, %c0_10] : memref<3x17x17xf32, #tpu.memory_space<vmem>>, vector<1x17x17xf32>
    %11 = vector.shape_cast %10 : vector<1x17x17xf32> to vector<17x17xf32>
    %cst_11 = arith.constant dense<0.000000e+00> : vector<8x17xf32>
    %12 = tpu.matmul %9, %11, %cst_11 {dimension_numbers = #tpu.dot_dimension_numbers<[1], [0], [0], [1], [0, 0, 1, 1], [], []>} : vector<8x17xf32>, vector<17x17xf32>, vector<8x17xf32> -> vector<8x17xf32>
    %cst_12 = arith.constant 0.000000e+00 : f32
    %13 = vector.broadcast %cst_12 : f32 to vector<8x17xf32>
    %14 = arith.maximumf %12, %13 : vector<8x17xf32>
    %c1 = arith.constant 1 : index
    %c0_13 = arith.constant 0 : index
    %c0_14 = arith.constant 0 : index
    %15 = vector.load %arg5[%c1, %c0_13, %c0_14] : memref<3x17x17xf32, #tpu.memory_space<vmem>>, vector<1x17x17xf32>
    %16 = vector.shape_cast %15 : vector<1x17x17xf32> to vector<17x17xf32>
    %cst_15 = arith.constant dense<0.000000e+00> : vector<8x17xf32>
    %17 = tpu.matmul %14, %16, %cst_15 {dimension_numbers = #tpu.dot_dimension_numbers<[1], [0], [0], [1], [0, 0, 1, 1], [], []>} : vector<8x17xf32>, vector<17x17xf32>, vector<8x17xf32> -> vector<8x17xf32>
    %cst_16 = arith.constant 0.000000e+00 : f32
    %18 = vector.broadcast %cst_16 : f32 to vector<8x17xf32>
    %19 = arith.maximumf %17, %18 : vector<8x17xf32>
    %c2 = arith.constant 2 : index
    %c0_17 = arith.constant 0 : index
    %c0_18 = arith.constant 0 : index
    %20 = vector.load %arg5[%c2, %c0_17, %c0_18] : memref<3x17x17xf32, #tpu.memory_space<vmem>>, vector<1x17x17xf32>
    %21 = vector.shape_cast %20 : vector<1x17x17xf32> to vector<17x17xf32>
    %cst_19 = arith.constant dense<0.000000e+00> : vector<8x17xf32>
    %22 = tpu.matmul %19, %21, %cst_19 {dimension_numbers = #tpu.dot_dimension_numbers<[1], [0], [0], [1], [0, 0, 1, 1], [], []>} : vector<8x17xf32>, vector<17x17xf32>, vector<8x17xf32> -> vector<8x17xf32>
    %23 = vector.extract_strided_slice %22 {offsets = [0, 0], sizes = [8, 16], strides = [1, 1]} : vector<8x17xf32> to vector<8x16xf32>
    %24 = tpu.iota {dimensions = array<i32: 1>} : vector<8x16xi32>
    %c2_i32 = arith.constant 2 : i32
    %25 = vector.broadcast %c2_i32 : i32 to vector<8x16xi32>
    %26 = arith.cmpi slt, %24, %25 : vector<8x16xi32>
    %c2_i32_20 = arith.constant 2 : i32
    %27 = vector.broadcast %c2_i32_20 : i32 to vector<8x16xi32>
    %28 = arith.cmpi sge, %24, %27 : vector<8x16xi32>
    %c6_i32 = arith.constant 6 : i32
    %29 = vector.broadcast %c6_i32 : i32 to vector<8x16xi32>
    %30 = arith.cmpi slt, %24, %29 : vector<8x16xi32>
    %31 = arith.andi %28, %30 : vector<8x16xi1>
    %c6_i32_21 = arith.constant 6 : i32
    %32 = vector.broadcast %c6_i32_21 : i32 to vector<8x16xi32>
    %33 = arith.cmpi slt, %24, %32 : vector<8x16xi32>
    %cst_22 = arith.constant -1.000000e+30 : f32
    %34 = vector.broadcast %cst_22 : f32 to vector<8x16xf32>
    %35 = arith.select %26, %23, %34 : vector<8x16xi1>, vector<8x16xf32>
    %cst_23 = arith.constant dense<0xFF800000> : vector<8xf32>
    %36 = vector.multi_reduction <maximumf>, %35, %cst_23 [1] : vector<8x16xf32> to vector<8xf32>
    %37 = vector.shape_cast %36 : vector<8xf32> to vector<8x1xf32>
    %cst_24 = arith.constant -1.000000e+30 : f32
    %38 = vector.broadcast %cst_24 : f32 to vector<8x16xf32>
    %39 = arith.select %31, %23, %38 : vector<8x16xi1>, vector<8x16xf32>
    %cst_25 = arith.constant dense<0xFF800000> : vector<8xf32>
    %40 = vector.multi_reduction <maximumf>, %39, %cst_25 [1] : vector<8x16xf32> to vector<8xf32>
    %41 = vector.shape_cast %40 : vector<8xf32> to vector<8x1xf32>
    %42 = vector.shape_cast %37 : vector<8x1xf32> to vector<8x1xf32>
    %43 = vector.broadcast %42 : vector<8x1xf32> to vector<8x16xf32>
    %44 = vector.shape_cast %41 : vector<8x1xf32> to vector<8x1xf32>
    %45 = vector.broadcast %44 : vector<8x1xf32> to vector<8x16xf32>
    %46 = arith.select %26, %43, %45 : vector<8x16xi1>, vector<8x16xf32>
    %47 = arith.subf %23, %46 : vector<8x16xf32>
    %cst_26 = arith.constant 0.000000e+00 : f32
    %48 = vector.broadcast %cst_26 : f32 to vector<8x16xf32>
    %49 = arith.select %33, %47, %48 : vector<8x16xi1>, vector<8x16xf32>
    %50 = math.exp %49 : vector<8x16xf32>
    %cst_27 = arith.constant 0.000000e+00 : f32
    %51 = vector.broadcast %cst_27 : f32 to vector<8x16xf32>
    %52 = arith.select %26, %50, %51 : vector<8x16xi1>, vector<8x16xf32>
    %cst_28 = arith.constant dense<0.000000e+00> : vector<8xf32>
    %53 = vector.multi_reduction <add>, %52, %cst_28 [1] : vector<8x16xf32> to vector<8xf32>
    %54 = vector.shape_cast %53 : vector<8xf32> to vector<8x1xf32>
    %cst_29 = arith.constant 0.000000e+00 : f32
    %55 = vector.broadcast %cst_29 : f32 to vector<8x16xf32>
    %56 = arith.select %31, %50, %55 : vector<8x16xi1>, vector<8x16xf32>
    %cst_30 = arith.constant dense<0.000000e+00> : vector<8xf32>
    %57 = vector.multi_reduction <add>, %56, %cst_30 [1] : vector<8x16xf32> to vector<8xf32>
    %58 = vector.shape_cast %57 : vector<8xf32> to vector<8x1xf32>
    %59 = vector.shape_cast %54 : vector<8x1xf32> to vector<8x1xf32>
    %60 = vector.broadcast %59 : vector<8x1xf32> to vector<8x16xf32>
    %61 = vector.shape_cast %58 : vector<8x1xf32> to vector<8x1xf32>
    %62 = vector.broadcast %61 : vector<8x1xf32> to vector<8x16xf32>
    %63 = arith.select %26, %60, %62 : vector<8x16xi1>, vector<8x16xf32>
    %64 = tpu.reciprocal %63 {approx = true} : vector<8x16xf32> -> vector<8x16xf32>
    %65 = arith.mulf %50, %64 : vector<8x16xf32>
    %66 = arith.select %33, %65, %23 : vector<8x16xi1>, vector<8x16xf32>
    %c0_31 = arith.constant 0 : index
    %c0_32 = arith.constant 0 : index
    %c0_33 = arith.constant 0 : index
    %67 = vector.load %arg6[%c0_31, %c0_32, %c0_33] : memref<1x8x16xf32, #tpu.memory_space<vmem>>, vector<1x8x16xf32>
    %68 = vector.shape_cast %67 : vector<1x8x16xf32> to vector<8x16xf32>
    %69 = vector.shape_cast %66 : vector<8x16xf32> to vector<1x8x16xf32>
    tpu.vector_store %arg6[%c0_31, %c0_32, %c0_33], %69 {strides = array<i32>} : memref<1x8x16xf32, #tpu.memory_space<vmem>>, vector<1x8x16xf32>,
    %70 = vector.extract_strided_slice %19 {offsets = [0, 0], sizes = [8, 10], strides = [1, 1]} : vector<8x17xf32> to vector<8x10xf32>
    %c0_34 = arith.constant 0 : index
    %c0_35 = arith.constant 0 : index
    %71 = vector.load %arg7[%c0_34, %c0_35] : memref<8x10xf32, #tpu.memory_space<vmem>>, vector<8x10xf32>
    tpu.vector_store %arg7[%c0_34, %c0_35], %70 {strides = array<i32>} : memref<8x10xf32, #tpu.memory_space<vmem>>, vector<8x10xf32>,
    return
  }
  func.func @transform_0(%arg0: i32, %arg1: memref<1xi32, #tpu.memory_space<smem>>) -> (i32, i32, i32) {
    %c0_i32 = arith.constant 0 : i32
    %c0_i32_0 = arith.constant 0 : i32
    %c0_i32_1 = arith.constant 0 : i32
    return %arg0, %c0_i32, %c0_i32_0 : i32, i32, i32
  }
  func.func @transform_1(%arg0: i32, %arg1: memref<1xi32, #tpu.memory_space<smem>>) -> (i32, i32, i32) {
    %c0_i32 = arith.constant 0 : i32
    %c0_i32_0 = arith.constant 0 : i32
    %c0_i32_1 = arith.constant 0 : i32
    return %arg0, %c0_i32, %c0_i32_0 : i32, i32, i32
  }
  func.func @transform_2(%arg0: i32, %arg1: memref<1xi32, #tpu.memory_space<smem>>) -> (i32, i32, i32) {
    %c0 = arith.constant 0 : index
    %0 = memref.load %arg1[%c0] : memref<1xi32, #tpu.memory_space<smem>>
    %c0_i32 = arith.constant 0 : i32
    %c0_i32_0 = arith.constant 0 : i32
    %c0_i32_1 = arith.constant 0 : i32
    return %0, %c0_i32, %c0_i32_0 : i32, i32, i32
  }
  func.func @transform_3(%arg0: i32, %arg1: memref<1xi32, #tpu.memory_space<smem>>) -> (i32, i32, i32) {
    %c0_i32 = arith.constant 0 : i32
    %c0_i32_0 = arith.constant 0 : i32
    %c0_i32_1 = arith.constant 0 : i32
    %c0_i32_2 = arith.constant 0 : i32
    return %c0_i32, %c0_i32_0, %c0_i32_1 : i32, i32, i32
  }
  func.func @transform_4(%arg0: i32, %arg1: memref<1xi32, #tpu.memory_space<smem>>) -> (i32, i32, i32) {
    %c0_i32 = arith.constant 0 : i32
    %c0_i32_0 = arith.constant 0 : i32
    %c0_i32_1 = arith.constant 0 : i32
    return %arg0, %c0_i32, %c0_i32_0 : i32, i32, i32
  }
}

</mosaic_0001>

<llo_original>
// kernel: aria_actor_rollout.1
$region0: #{aria_actor_rollout.1}
  #allocation0 [shape = 'u32[]', space=smem, size = 0x4, offset = 0x4, fixed_abs, tag = 'smem constant byte address 0x4 - core index']
  #allocation1 [shape = 'u32[72,128]{1,0:T(1,128)}', space=vmem, size = 0x9000, scoped, tag = 'internal scratch']
  #allocation2 [shape = 'f32[8,10]{1,0:T(8,128)}', space=vmem, size = 0x1000, scoped, tag = 'scratch operand']
  #allocation3 [shape = 's32[1]{0}', space=sflag, size = 0x4, scoped, tag = 'scoped memory for aria_actor_rollout.1']
  #allocation4 [shape = 's32[1]{0:T(128)S(6)}', space=smem, size = 0x200, scoped, tag = 'prefetched SMEM operand 0']
  %s0 = inlined_call_operand.<no memory space> [shape: s32[1], index: 0, kind: input, shape index: {}]
  %s1 = inlined_call_operand.vmem [shape: f32[6,8,2], index: 1, kind: input, shape index: {}]
  %s2 = inlined_call_operand.vmem [shape: f32[6,8,4], index: 2, kind: input, shape index: {}]
  %s3 = inlined_call_operand.vmem [shape: f32[4,8,10], index: 3, kind: input, shape index: {}]
  %s4 = inlined_call_operand.vmem [shape: f32[3,17,17], index: 4, kind: input, shape index: {}]
  %s5 = inlined_call_operand.hbm [shape: f32[6,8,16], index: 5, kind: output, shape index: {}]
  %s6 = sld [smem:[#allocation0]]
  $region53: #{aria_actor_rollout.1} parent=0
    _
  %s8 = ssub.s32 1, %s6
  %s9 = scalar_select 0, %s8, %s6
  %10 = sst [smem:[#allocation4]] %s0
  $region1: #{aria_actor_rollout.1} parent=0
    #allocation5 [shape = 'u8[8192]{0}', space=vmem, size = 0x2000, scoped, tag = 'output window, operand 0']
    #allocation6 [shape = 's32[2]{0}', space=sflag, size = 0x8, scoped, tag = 'scoped memory for aria_actor_rollout.1']
    %11 = vsyncpa [#allocation6], 0
    %s12 = scalar_lea.sflag [#allocation6], 1
    %13 = vsyncpa %s12, 0
    loop: start=0, step=1, limit=8
    $region2: #{aria_actor_rollout.1} parent=1 // loop_pre_header
      _
    $region3: #{aria_actor_rollout.1} parent=1 // loop_header
      %s15 = sphi 0, %s19
      %p16 = scmp.ge.s32.totalorder %s15, 8
      %s25 = sphi 0, %s27
      %s28 = sphi 0, %s25
      %s29 = sphi 0, %s28
      %s45 = sphi 0, %s29
      %s51 = sphi 0, %s53
      %s54 = sphi 0, %s51
      %s55 = sphi 0, %s54
      %s71 = sphi 0, %s55
      %s79 = sphi 0, %s81
      %s82 = sphi 0, %s79
      %s83 = sphi 0, %s82
      %s99 = sphi 0, %s83
      %s103 = sphi 0, %s103
      %s105 = sphi 0, %s103
      %s106 = sphi 0, %s105
      %s120 = sphi 0, %s106
      %s126 = sphi 0, %s128
      %s129 = sphi 0, %s126
      %s130 = sphi 0, %s129
      %s146 = sphi 0, %s130
    $region4: #{aria_actor_rollout.1} parent=1 // loop_header_branch
      %18 = sbr.rel (%p16) target = $region8
    $region5: #{aria_actor_rollout.1} parent=1 // loop_body
      %s20 = ssub.s32 %s15, 1
      %s21 = ssub.s32 %s15, 2
      %s22 = sadd.s32 %s15, 1
      %s23 = ssub.s32 %s15, %s22
      %p24 = scmp.eq.s32.totalorder %s23, 0
      %s26 = sadd.s32 %s25, 1
      %s27 = scalar_select %p24, %s25, %s26
      %p30 = pneg %p24
      %p31 = scmp.eq.s32.totalorder %s15, 5
      %p32 = por %p30, %p31
      %p33 = scmp.ne.s32.totalorder %s25, %s28
      %p34 = scmp.eq.s32.totalorder %s15, 0
      %p35 = por %p33, %p34
      %p36 = scmp.ne.s32.totalorder %s25, %s28
      %p37 = scmp.eq.s32.totalorder %s20, 5
      %p38 = por %p36, %p37
      %p39 = scmp.ne.s32.totalorder %s28, %s29
      %p40 = scmp.eq.s32.totalorder %s20, 0
      %p41 = por %p39, %p40
      %p42 = scmp.ne.s32.totalorder %s28, %s29
      %p43 = scmp.eq.s32.totalorder %s21, 5
      %p44 = por %p42, %p43
      %p46 = scmp.ne.s32.totalorder %s29, %s45
      %p47 = scmp.eq.s32.totalorder %s21, 0
      %p48 = por %p46, %p47
      %s49 = ssub.s32 %s15, %s22
      %p50 = scmp.eq.s32.totalorder %s49, 0
      %s52 = sadd.s32 %s51, 1
      %s53 = scalar_select %p50, %s51, %s52
      %p56 = pneg %p50
      %p57 = scmp.eq.s32.totalorder %s15, 5
      %p58 = por %p56, %p57
      %p59 = scmp.ne.s32.totalorder %s51, %s54
      %p60 = scmp.eq.s32.totalorder %s15, 0
      %p61 = por %p59, %p60
      %p62 = scmp.ne.s32.totalorder %s51, %s54
      %p63 = scmp.eq.s32.totalorder %s20, 5
      %p64 = por %p62, %p63
      %p65 = scmp.ne.s32.totalorder %s54, %s55
      %p66 = scmp.eq.s32.totalorder %s20, 0
      %p67 = por %p65, %p66
      %p68 = scmp.ne.s32.totalorder %s54, %s55
      %p69 = scmp.eq.s32.totalorder %s21, 5
      %p70 = por %p68, %p69
      %p72 = scmp.ne.s32.totalorder %s55, %s71
      %p73 = scmp.eq.s32.totalorder %s21, 0
      %p74 = por %p72, %p73
      %s75 = sld [smem:[#allocation4]]
      %s76 = sld [smem:[#allocation4]]
      %s77 = ssub.s32 %s75, %s76
      %p78 = scmp.eq.s32.totalorder %s77, 0
      %s80 = sadd.s32 %s79, 1
      %s81 = scalar_select %p78, %s79, %s80
      %p84 = pneg %p78
      %p85 = scmp.eq.s32.totalorder %s15, 5
      %p86 = por %p84, %p85
      %p87 = scmp.ne.s32.totalorder %s79, %s82
      %p88 = scmp.eq.s32.totalorder %s15, 0
      %p89 = por %p87, %p88
      %p90 = scmp.ne.s32.totalorder %s79, %s82
      %p91 = scmp.eq.s32.totalorder %s20, 5
      %p92 = por %p90, %p91
      %p93 = scmp.ne.s32.totalorder %s82, %s83
      %p94 = scmp.eq.s32.totalorder %s20, 0
      %p95 = por %p93, %p94
      %p96 = scmp.ne.s32.totalorder %s82, %s83
      %p97 = scmp.eq.s32.totalorder %s21, 5
      %p98 = por %p96, %p97
      %p100 = scmp.ne.s32.totalorder %s83, %s99
      %p101 = scmp.eq.s32.totalorder %s21, 0
      %p102 = por %p100, %p101
      %s104 = sadd.s32 %s103, 1
      %p107 = scmp.eq.s32.totalorder %s15, 5
      %p108 = scmp.ne.s32.totalorder %s103, %s105
      %p109 = scmp.eq.s32.totalorder %s15, 0
      %p110 = por %p108, %p109
      %p111 = scmp.ne.s32.totalorder %s103, %s105
      %p112 = scmp.eq.s32.totalorder %s20, 5
      %p113 = por %p111, %p112
      %p114 = scmp.ne.s32.totalorder %s105, %s106
      %p115 = scmp.eq.s32.totalorder %s20, 0
      %p116 = por %p114, %p115
      %p117 = scmp.ne.s32.totalorder %s105, %s106
      %p118 = scmp.eq.s32.totalorder %s21, 5
      %p119 = por %p117, %p118
      %p121 = scmp.ne.s32.totalorder %s106, %s120
      %p122 = scmp.eq.s32.totalorder %s21, 0
      %p123 = por %p121, %p122
      %s124 = ssub.s32 %s15, %s22
      %p125 = scmp.eq.s32.totalorder %s124, 0
      %s127 = sadd.s32 %s126, 1
      %s128 = scalar_select %p125, %s126, %s127
      %p131 = pneg %p125
      %p132 = scmp.eq.s32.totalorder %s15, 5
      %p133 = por %p131, %p132
      %p134 = scmp.ne.s32.totalorder %s126, %s129
      %p135 = scmp.eq.s32.totalorder %s15, 0
      %p136 = por %p134, %p135
      %p137 = scmp.ne.s32.totalorder %s126, %s129
      %p138 = scmp.eq.s32.totalorder %s20, 5
      %p139 = por %p137, %p138
      %p140 = scmp.ne.s32.totalorder %s129, %s130
      %p141 = scmp.eq.s32.totalorder %s20, 0
      %p142 = por %p140, %p141
      %p143 = scmp.ne.s32.totalorder %s129, %s130
      %p144 = scmp.eq.s32.totalorder %s21, 5
      %p145 = por %p143, %p144
      %p147 = scmp.ne.s32.totalorder %s130, %s146
      %p148 = scmp.eq.s32.totalorder %s21, 0
      %p149 = por %p147, %p148
      %p150 = scmp.le.s32.totalorder 1, %s15
      %p151 = scmp.lt.s32.totalorder %s15, 7
      %p152 = pnand %p150, %p151
      %p153 = pneg %p152
      // Predicated region
      $region9: #{aria_actor_rollout.1} parent=5 // pred_check
        _
      $region10: #{aria_actor_rollout.1} parent=5 // pred_check_branch
        %155 = sbr.rel (%p152) target = $region12
      $region11: #{aria_actor_rollout.1} parent=5 // pred_region
        %s156 = ssub.s32 %s15, 1
        // Predicated region
        $region13: #{aria_actor_rollout.1} parent=11 // pred_check
          %p157 = pneg %p95
        $region14: #{aria_actor_rollout.1} parent=11 // pred_check_branch
          %159 = sbr.rel (%p157) target = $region16
        $region15: #{aria_actor_rollout.1} parent=11 // pred_region
          %s160 = sld [smem:[#allocation4]]
          %p161 = scmp.lt.s32.totalorder %s160, 3
          %s162 = scalar_select %p161, %s160, 3
          %s163 = smul.addr %s162, 8
          %s164 = scalar_lea.vmem %s3, %s163
          %s165 = sld [smem:[#allocation4]]
        $region16: #{aria_actor_rollout.1} parent=11 // pred_fallthru
          _
        // Predicated region
        $region17: #{aria_actor_rollout.1} parent=11 // pred_check
          %p166 = pneg %p116
        $region18: #{aria_actor_rollout.1} parent=11 // pred_check_branch
          %168 = sbr.rel (%p166) target = $region20
        $region19: #{aria_actor_rollout.1} parent=11 // pred_region
          _
        $region20: #{aria_actor_rollout.1} parent=11 // pred_fallthru
          _
      $region12: #{aria_actor_rollout.1} parent=5 // pred_fallthru
        _
      %p169 = scmp.lt.s32.totalorder %s15, 6
      // Predicated region
      $region21: #{aria_actor_rollout.1} parent=5 // pred_check
        %p170 = pneg %p169
      $region22: #{aria_actor_rollout.1} parent=5 // pred_check_branch
        %172 = sbr.rel (%p170) target = $region24
      $region23: #{aria_actor_rollout.1} parent=5 // pred_region
        // Predicated region
        $region25: #{aria_actor_rollout.1} parent=23 // pred_check
          %p173 = pneg %p35
        $region26: #{aria_actor_rollout.1} parent=23 // pred_check_branch
          %175 = sbr.rel (%p173) target = $region28
        $region27: #{aria_actor_rollout.1} parent=23 // pred_region
          %p176 = scmp.lt.s32.totalorder %s15, 5
          %s177 = scalar_select %p176, %s15, 5
          %s178 = smul.addr %s177, 8
          %s179 = scalar_lea.vmem %s1, %s178
        $region28: #{aria_actor_rollout.1} parent=23 // pred_fallthru
          _
        // Predicated region
        $region29: #{aria_actor_rollout.1} parent=23 // pred_check
          %p180 = pneg %p61
        $region30: #{aria_actor_rollout.1} parent=23 // pred_check_branch
          %182 = sbr.rel (%p180) target = $region32
        $region31: #{aria_actor_rollout.1} parent=23 // pred_region
          %p183 = scmp.lt.s32.totalorder %s15, 5
          %s184 = scalar_select %p183, %s15, 5
          %s185 = smul.addr %s184, 8
          %s186 = scalar_lea.vmem %s2, %s185
        $region32: #{aria_actor_rollout.1} parent=23 // pred_fallthru
          _
      $region24: #{aria_actor_rollout.1} parent=5 // pred_fallthru
        _
      %p187 = scmp.le.s32.totalorder 1, %s15
      %p188 = scmp.lt.s32.totalorder %s15, 7
      %p189 = pnand %p187, %p188
      %p190 = pneg %p189
      // Predicated region
      $region33: #{aria_actor_rollout.1} parent=5 // pred_check
        _
      $region34: #{aria_actor_rollout.1} parent=5 // pred_check_branch
        %192 = sbr.rel (%p189) target = $region36
      $region35: #{aria_actor_rollout.1} parent=5 // pred_region
        %s193 = ssub.s32 %s15, 1
        %p194 = scmp.lt.s32.totalorder %s20, 5
        %s195 = scalar_select %p194, %s20, 5
        %s196 = smul.addr %s195, 8
        %s197 = scalar_lea.vmem %s1, %s196
        %p198 = pneg %p41
        %p199 = pneg %p38
        %p200 = scmp.lt.s32.totalorder %s20, 5
        %s201 = scalar_select %p200, %s20, 5
        %s202 = smul.addr %s201, 8
        %s203 = scalar_lea.vmem %s2, %s202
        %p204 = pneg %p67
        %p205 = pneg %p64
        %s206 = sld [smem:[#allocation4]]
        %p207 = scmp.lt.s32.totalorder %s206, 3
        %s208 = scalar_select %p207, %s206, 3
        %s209 = smul.addr %s208, 8
        %s210 = scalar_lea.vmem %s3, %s209
        %p211 = pneg %p95
        %p212 = pneg %p92
        %p213 = pneg %p116
        %p214 = pneg %p113
        %p215 = pneg %p142
        %p216 = pneg %p139
        %s217 = sand.u32 %s129, 1
        %s218 = scalar_lea.sflag [#allocation6], %s217
        %s219 = sand.u32 %s129, 1
        %s220 = smul.addr %s219, 8
        %s221 = scalar_lea.vmem [#allocation5], %s220
        %p222 = scmp.lt.s32.totalorder %s20, 5
        %s223 = scalar_select %p222, %s20, 5
        %s224 = smul.addr %s223, 8
        %s225 = scalar_lea.vmem %s1, %s224
        %p226 = scmp.lt.s32.totalorder %s20, 5
        %s227 = scalar_select %p226, %s20, 5
        %s228 = smul.addr %s227, 8
        %s229 = scalar_lea.vmem %s2, %s228
        %s230 = sld [smem:[#allocation4]]
        %p231 = scmp.lt.s32.totalorder %s230, 3
        %s232 = scalar_select %p231, %s230, 3
        %s233 = smul.addr %s232, 8
        %s234 = scalar_lea.vmem %s3, %s233
        %s235 = sld [smem:[#allocation4]]
        %p236 = scmp.eq.s32.totalorder %s20, 0
        // Predicated region
        $region37: #{aria_actor_rollout.1} parent=35 // pred_check
          %p237 = pneg %p236
        $region38: #{aria_actor_rollout.1} parent=35 // pred_check_branch
          %239 = sbr.rel (%p237) target = $region40
        $region39: #{aria_actor_rollout.1} parent=35 // pred_region
          %v240 = vld [vmem:[%s234] sm:$0xff]
          %vm241 = vcmask 80896
          %242 = vst.msk [vmem:[#allocation2] sm:$0xff] %vm241, %v240
        $region40: #{aria_actor_rollout.1} parent=35 // pred_fallthru
          _
        %v243 = vld [vmem:[%s225] sm:$0xff]
        %v244 = vld [vmem:[#allocation2] sm:$0xff]
        %v245 = vld [vmem:[%s229] sm:$0xff]
        %247 = vrot.lane.b32.xlu0 %v244, 2
        %v248 = vpop.permute.xlu0 %247
        %251 = vrot.lane.b32.xlu0 %v245, 12
        %v252 = vpop.permute.xlu0 %251
        %vm254 = vcmask 15360
        %v255 = vsel %vm254, %v243, %v248
        %vm256 = vcmask 97280
        %v257 = vsel %vm256, %v255, %v252
        %vm258 = vcmask 130048
        %v259 = vsel %vm258, %v257, 1.0
        %v260 = vld [vmem:[%s4] sm:$0xff]
        %v261 = vld [vmem:[%s4 + $0x8] sm:$0xff]
        %v262 = vld [vmem:[%s4 + $0x10] sm:$0x1]
        %vm263 = vcmask 138240
        %v265 = vsel %vm263, %v259, 0
        %vm267 = vcmask 1040384
        %v269 = vsel %vm267, %v262, 0
        %271 = vmatpush.msra.mxu0 0.0
        %272 = vmatpush.msra.mxu0 0.0
        %273 = vmatpush.msra.mxu0 0.0
        %274 = vmatpush.msra.mxu0 0.0
        %275 = vmatpush.msra.mxu0 0.0
        %276 = vmatpush.msra.mxu0 0.0
        %277 = vmatpush.msra.mxu0 0.0
        %278 = vmatpush.msra.mxu0 0.0
        %279 = vmatpush.msra.mxu0 0.0
        %280 = vmatpush.msra.mxu0 0.0
        %281 = vmatpush.msra.mxu0 0.0
        %282 = vmatpush.msra.mxu0 0.0
        %283 = vmatpush.msra.mxu0 0.0
        %284 = vmatpush.msra.mxu0 %v269
        %285 = vmatpush.msra.mxu0 %v261
        %286 = vmatpush.msra.mxu0 %v260
        %287 = vmatmul.f32.gmra.mxu0 %v265
        %v288 = vpop.f32.mrf.mxu0
        %v289 = vadd.f32 0.0, %v288
        %290 = vdwg.mxu0
        %v291 = vmax.f32 %v289, 0.0
        %s292 = scalar_lea.vmem %s4, 24
        %v293 = vld [vmem:[%s292] sm:$0xff]
        %v294 = vld [vmem:[%s292 + $0x8] sm:$0xff]
        %v295 = vld [vmem:[%s292 + $0x10] sm:$0x1]
        %v297 = vsel %vm263, %v291, 0
        %v300 = vsel %vm267, %v295, 0
        %302 = vmatpush.msra.mxu0 0.0
        %303 = vmatpush.msra.mxu0 0.0
        %304 = vmatpush.msra.mxu0 0.0
        %305 = vmatpush.msra.mxu0 0.0
        %306 = vmatpush.msra.mxu0 0.0
        %307 = vmatpush.msra.mxu0 0.0
        %308 = vmatpush.msra.mxu0 0.0
        %309 = vmatpush.msra.mxu0 0.0
        %310 = vmatpush.msra.mxu0 0.0
        %311 = vmatpush.msra.mxu0 0.0
        %312 = vmatpush.msra.mxu0 0.0
        %313 = vmatpush.msra.mxu0 0.0
        %314 = vmatpush.msra.mxu0 0.0
        %315 = vmatpush.msra.mxu0 %v300
        %316 = vmatpush.msra.mxu0 %v294
        %317 = vmatpush.msra.mxu0 %v293
        %318 = vmatmul.f32.gmra.mxu0 %v297
        %v319 = vpop.f32.mrf.mxu0
        %v320 = vadd.f32 0.0, %v319
        %321 = vdwg.mxu0
        %v322 = vmax.f32 %v320, 0.0
        %s323 = scalar_lea.vmem %s4, 48
        %v324 = vld [vmem:[%s323] sm:$0xff]
        %v325 = vld [vmem:[%s323 + $0x8] sm:$0xff]
        %v326 = vld [vmem:[%s323 + $0x10] sm:$0x1]
        %v328 = vsel %vm263, %v322, 0
        %v331 = vsel %vm267, %v326, 0
        %333 = vmatpush.msra.mxu0 0.0
        %334 = vmatpush.msra.mxu0 0.0
        %335 = vmatpush.msra.mxu0 0.0
        %336 = vmatpush.msra.mxu0 0.0
        %337 = vmatpush.msra.mxu0 0.0
        %338 = vmatpush.msra.mxu0 0.0
        %339 = vmatpush.msra.mxu0 0.0
        %340 = vmatpush.msra.mxu0 0.0
        %341 = vmatpush.msra.mxu0 0.0
        %342 = vmatpush.msra.mxu0 0.0
        %343 = vmatpush.msra.mxu0 0.0
        %344 = vmatpush.msra.mxu0 0.0
        %345 = vmatpush.msra.mxu0 0.0
        %346 = vmatpush.msra.mxu0 %v331
        %347 = vmatpush.msra.mxu0 %v325
        %348 = vmatpush.msra.mxu0 %v324
        %349 = vmatmul.f32.gmra.mxu0 %v328
        %v350 = vpop.f32.mrf.mxu0
        %v351 = vadd.f32 0.0, %v350
        %352 = vdwg.mxu0
        %v353 = vlaneseq
        %v354 = vand.u32 %v353, 127
        %vm355 = vcmp.lt.s32.totalorder %v354, 2
        %vm356 = vcmp.ge.s32.totalorder %v354, 2
        %vm357 = vcmp.lt.s32.totalorder %v354, 6
        %vm358 = vmand %vm356, %vm357
        %v359 = vsel %vm355, %v351, -1e+30
        %v360 = vsel %vm258, %v359, -inf
        %361 = vmax.xlane.f32.xlu0 %v360
        %v362 = vpop.xlane.xlu0 %361
        %v363 = vsel %vm358, %v351, -1e+30
        %v364 = vsel %vm258, %v363, -inf
        %365 = vmax.xlane.f32.xlu0 %v364
        %v366 = vpop.xlane.xlu0 %365
        %v367 = vsel %vm355, %v362, %v366
        %v368 = vsub.f32 %v351, %v367
        %v369 = vsel %vm357, %v368, 0.0
        %v370 = vmul.f32 %v369, 1.442695
        %v371 = vpow.pop %v370
        %v372 = vsel %vm355, %v371, 0.0
        %v373 = vsel %vm258, %v372, 0.0
        %374 = vadd.xlane.f32.xlu0 %v373
        %v375 = vpop.xlane.xlu0 %374
        %v376 = vsel %vm358, %v371, 0.0
        %v377 = vsel %vm258, %v376, 0.0
        %378 = vadd.xlane.f32.xlu0 %v377
        %v379 = vpop.xlane.xlu0 %378
        %v380 = vsel %vm355, %v375, %v379
        %v381 = vrcp.pop %v380
        %v382 = vmul.f32 %v371, %v381
        %v383 = vsel %vm357, %v382, %v351
        %384 = vst.msk [vmem:[%s221] sm:$0xff] %vm258, %v383
        %vm385 = vcmask 80896
        %386 = vst.msk [vmem:[#allocation2] sm:$0xff] %vm385, %v322
        %s387 = sand.u32 %s129, 1
        %s388 = scalar_lea.sflag [#allocation6], %s387
        %s389 = sand.u32 %s129, 1
        %s390 = smul.addr %s389, 8
        %s391 = scalar_lea.vmem [#allocation5], %s390
        // Predicated region
        $region41: #{aria_actor_rollout.1} parent=35 // pred_check
          %p392 = pneg %p139
        $region42: #{aria_actor_rollout.1} parent=35 // pred_check_branch
          %394 = sbr.rel (%p392) target = $region44
        $region43: #{aria_actor_rollout.1} parent=35 // pred_region
          %396 = vsyncadd %s388, 0
          %s397 = smul.addr %s20, 8
          %s398 = scalar_lea.hbm %s5, %s397
          %s400 = sshll.u32 %s391, 4
          %s401 = int_to_ptr.vmem [resolvable:$true] %s400
          %s402 = sshll.u32 %s398, 4
          %s403 = int_to_ptr.hbm [resolvable:$true] %s402
          %405 = dma.vmem_to_hbm [thread:$0]  %s401, 128, %s403, %s388
        $region44: #{aria_actor_rollout.1} parent=35 // pred_fallthru
          _
      $region36: #{aria_actor_rollout.1} parent=5 // pred_fallthru
        _
      %p406 = scmp.le.s32.totalorder 2, %s15
      // Predicated region
      $region45: #{aria_actor_rollout.1} parent=5 // pred_check
        %p407 = pneg %p406
      $region46: #{aria_actor_rollout.1} parent=5 // pred_check_branch
        %409 = sbr.rel (%p407) target = $region48
      $region47: #{aria_actor_rollout.1} parent=5 // pred_region
        %s410 = ssub.s32 %s15, 2
        // Predicated region
        $region49: #{aria_actor_rollout.1} parent=47 // pred_check
          %p411 = pneg %p145
        $region50: #{aria_actor_rollout.1} parent=47 // pred_check_branch
          %413 = sbr.rel (%p411) target = $region52
        $region51: #{aria_actor_rollout.1} parent=47 // pred_region
          %s414 = sand.u32 %s130, 1
          %s415 = scalar_lea.sflag [#allocation6], %s414
          %s416 = sand.u32 %s130, 1
          %s417 = smul.addr %s416, 8
          %s418 = scalar_lea.vmem [#allocation5], %s417
          %420 = dma.done %s415, 128
        $region52: #{aria_actor_rollout.1} parent=47 // pred_fallthru
          _
      $region48: #{aria_actor_rollout.1} parent=5 // pred_fallthru
        _
    $region6: #{aria_actor_rollout.1} parent=1 // loop_footer
      %s19 = sadd.s32 1, %s15
    $region7: #{aria_actor_rollout.1} parent=1 // loop_footer_branch
      %14 = sbr.rel target = $region3
    $region8: #{aria_actor_rollout.1} parent=1 // loop_exit
      _
    %421 = vsyncpa [#allocation6], 1
    %s422 = scalar_lea.sflag [#allocation6], 1
    %423 = vsyncpa %s422, 1

</llo_original>
